<compile_context>
chip_gen: v5e
topology: v5e:2x2
jax: 0.10.0
libtpu: 0.0.40
codegen_flags: <defaults>
</compile_context>

<pallas_src>
import math
from functools import lru_cache

import numpy as np

import jax
import jax.numpy as jnp
from jax.experimental import pallas as pl
from jax.experimental.pallas import tpu as pltpu


def _fixed_embedding_table_np(c_in: int, d_model: int) -> np.ndarray:
    """Fixed sinusoidal table, exactly as the PyTorch __init__ builds it (f32)."""
    position = np.arange(0, c_in, dtype=np.float32)[:, None]                 # (c_in, 1)
    div_term = np.exp(
        np.arange(0, d_model, 2, dtype=np.float32) * -(math.log(10000.0) / d_model)
    ).astype(np.float32)
    w = np.zeros((c_in, d_model), dtype=np.float32)
    w[:, 0::2] = np.sin(position * div_term)
    w[:, 1::2] = np.cos(position * div_term)
    return w


@lru_cache(maxsize=None)
def _packed_table(c_in: int, d_model: int, g: int) -> jax.Array:
    """Block-diagonal kron(I_g, W) table (g==1 -> plain W), cached per config."""
    w = _fixed_embedding_table_np(c_in, d_model)
    if g > 1:
        w = np.kron(np.eye(g, dtype=np.float32), w).astype(np.float32)
    return jnp.asarray(w, dtype=jnp.float32)


def _round_up(a: int, b: int) -> int:
    return ((a + b - 1) // b) * b


def _vmem_capacity_bytes() -> int:
    try:
        cap = int(pltpu.get_tpu_info().vmem_capacity_bytes)
        if cap > 0:
            return cap
    except Exception:
        pass
    return 64 << 20  # conservative default (v7x per-core VMEM)


def _make_embed_kernel(g: int):
    def kernel(idx_ref, w_ref, o_ref):
        # idx_ref: (rows, g) int32 -- idx[r, j] = token_index + j*c_in (or -1 if OOB/pad)
        # w_ref:   (g*c_in, g*d_model) f32 block-diagonal table (constant, single-buffered)
        # o_ref:   (rows, g*d_model) f32 lane-dense output tile
        idx = idx_ref[...]
        rows = idx.shape[0]
        k = w_ref.shape[0]                                       # g * c_in
        col = jax.lax.broadcasted_iota(jnp.int32, (rows, k), 1)
        hit = idx[:, 0:1] == col                                 # (rows, k) one-hot build
        for j in range(1, g):                                    # g is small & static
            hit = hit | (idx[:, j:j + 1] == col)
        onehot = hit.astype(w_ref.dtype)
        o_ref[...] = jnp.dot(onehot, w_ref[...], preferred_element_type=jnp.float32)

    return kernel


def fixed_embedding(x: jnp.ndarray, c_in: int, d_model: int) -> jnp.ndarray:
    """Pallas equivalent of FixedEmbedding(c_in, d_model)(x); x holds integer indices."""
    assert d_model % 2 == 0, "d_model must be even (as in the PyTorch module)"
    lead_shape = x.shape
    n = math.prod(lead_shape)

    # Pack g tokens per 128-lane output row when d_model < 128 -> unmasked, lane-dense stores.
    g = 128 // d_model if (d_model < 128 and 128 % d_model == 0) else 1
    # The kron'd table grows as g^2 * c_in * d_model; fall back to no packing if huge.
    if g > 1 and (g * c_in) * (g * d_model) * 4 > (8 << 20):
        g = 1
    out_width = g * d_model
    k_dim = g * c_in

    n_g = pl.cdiv(n, g) * g            # pad token count to a multiple of g only (<= g-1 extra)
    n_rows = n_g // g

    w_big = _packed_table(c_in, d_model, g)

    # ---- tile size from a generation-aware VMEM budget ----
    usable = max(16 << 20, min(_vmem_capacity_bytes() // 2, 64 << 20))
    table_bytes = k_dim * out_width * 4
    # double-buffered out tile + double-buffered (lane-padded to 128) idx tile, per row
    bytes_per_row = 2 * out_width * 4 + 2 * 128 * 4
    rows_budget = max(8, (usable - table_bytes - (2 << 20)) // bytes_per_row)

    target_rows = max(256, (2 << 20) // (out_width * 4))   # >= ~2 MiB of output per grid step
    target_rows = min(target_rows, max(256, 16384 // g))   # cap ~16K tokens per step
    rows_per_tile = int(min(target_rows, rows_budget))

    if n_rows >= 512:                                      # keep >= 2 steps for v7x megacore
        rows_per_tile = min(rows_per_tile, _round_up(pl.cdiv(n_rows, 2), 8))

    if n_rows < 8:
        rows_per_tile = n_rows                             # single block == array dims (legal)
    else:
        rows_per_tile = max(8, (min(rows_per_tile, n_rows) // 8) * 8)

    grid = (pl.cdiv(n_rows, rows_per_tile),)

    vmem_need = (2 * rows_per_tile * out_width * 4
                 + 2 * rows_per_tile * 128 * 4
                 + table_bytes + (2 << 20))
    vmem_limit = int(min(max(vmem_need, 16 << 20), usable))

    # ---- compact, pre-offset index tile: idx[r, j] = x[r*g + j] + j*c_in (or -1) ----
    x_flat = x.reshape(-1).astype(jnp.int32)
    if n_g != n:
        x_flat = jnp.pad(x_flat, (0, n_g - n))             # padded slots -> index 0, sliced later
    idx2 = x_flat.reshape(n_rows, g)
    offs = jnp.arange(g, dtype=jnp.int32)[None, :] * jnp.int32(c_in)
    idx_off = jnp.where((idx2 >= 0) & (idx2 < c_in), idx2 + offs, jnp.int32(-1))

    out = pl.pallas_call(
        _make_embed_kernel(g),
        out_shape=jax.ShapeDtypeStruct((n_rows, out_width), jnp.float32),
        grid_spec=pltpu.PrefetchScalarGridSpec(
            num_scalar_prefetch=0,
            grid=grid,
            in_specs=[
                # Compact token-index tile (marches with the grid).
                pl.BlockSpec((rows_per_tile, g), lambda i: (i, 0)),
                # Full table, constant block index -> single-buffered to save VMEM.
                pl.BlockSpec((k_dim, out_width), lambda i: (0, 0),
                             pipeline_mode=pl.Buffered(1)),
            ],
            out_specs=pl.BlockSpec((rows_per_tile, out_width), lambda i: (i, 0)),
        ),
        compiler_params=pltpu.CompilerParams(
            dimension_semantics=("parallel",),
            vmem_limit_bytes=vmem_limit,
        ),
    )(idx_off, w_big)

    # (n_rows, g*d_model) -> (n_g, d_model) is a free row-major reshape.
    out = out.reshape(n_g, d_model)
    if n_g != n:
        # Rare (only when n % g != 0): this slice materializes a copy of the output.
        out = out[:n]
    return out.reshape(*lead_shape, d_model)


if __name__ == "__main__":
    # Small shapes consistent with the module: c_in categories, d_model hidden.
    c_in, d_model = 16, 32
    batch, seq = 2, 8

    key = jax.random.PRNGKey(0)
    x = jax.random.randint(key, (batch, seq), minval=0, maxval=c_in, dtype=jnp.int32)

    y = jax.block_until_ready(fixed_embedding(x, c_in, d_model))

    # Reference check: plain-JAX gather from the same fixed table.
    w_ref = jnp.asarray(_fixed_embedding_table_np(c_in, d_model))
    y_ref = jnp.take(w_ref, x, axis=0)
    assert y.shape == (batch, seq, d_model)
    assert jnp.allclose(y, y_ref, atol=1e-6), "mismatch vs reference gather"

    print("KERNEL_OK")
</pallas_src>

<mosaic_0001>
module attributes {stable_mosaic.version = 11 : i64} {
  func.func @kernel(%arg0: i32, %arg1: memref<4x4xi32, #tpu.memory_space<vmem>>, %arg2: memref<64x128xf32, #tpu.memory_space<vmem>>, %arg3: memref<4x128xf32, #tpu.memory_space<vmem>>) attributes {dimension_semantics = [#tpu.dimension_semantics<parallel>], iteration_bounds = array<i64: 1>, scalar_prefetch = 0 : i64, scratch_operands = 0 : i64, tpu.core_type = #tpu.core_type<tc>, window_params = [{transform_indices = @transform_0, window_bounds = array<i64: 4, 4>}, {pipeline_mode = #tpu.pipeline_mode<synchronous>, transform_indices = @transform_1, window_bounds = array<i64: 64, 128>}, {transform_indices = @transform_2, window_bounds = array<i64: 4, 128>}]} {
    %c0 = arith.constant 0 : index
    %c0_0 = arith.constant 0 : index
    %0 = vector.load %arg1[%c0, %c0_0] : memref<4x4xi32, #tpu.memory_space<vmem>>, vector<4x4xi32>
    %1 = tpu.iota {dimensions = array<i32: 1>} : vector<4x64xi32>
    %2 = vector.extract_strided_slice %0 {offsets = [0, 0], sizes = [4, 1], strides = [1, 1]} : vector<4x4xi32> to vector<4x1xi32>
    %3 = vector.broadcast %2 : vector<4x1xi32> to vector<4x64xi32>
    %4 = arith.cmpi eq, %3, %1 : vector<4x64xi32>
    %5 = vector.extract_strided_slice %0 {offsets = [0, 1], sizes = [4, 1], strides = [1, 1]} : vector<4x4xi32> to vector<4x1xi32>
    %6 = vector.broadcast %5 : vector<4x1xi32> to vector<4x64xi32>
    %7 = arith.cmpi eq, %6, %1 : vector<4x64xi32>
    %8 = arith.ori %4, %7 : vector<4x64xi1>
    %9 = vector.extract_strided_slice %0 {offsets = [0, 2], sizes = [4, 1], strides = [1, 1]} : vector<4x4xi32> to vector<4x1xi32>
    %10 = vector.broadcast %9 : vector<4x1xi32> to vector<4x64xi32>
    %11 = arith.cmpi eq, %10, %1 : vector<4x64xi32>
    %12 = arith.ori %8, %11 : vector<4x64xi1>
    %13 = vector.extract_strided_slice %0 {offsets = [0, 3], sizes = [4, 1], strides = [1, 1]} : vector<4x4xi32> to vector<4x1xi32>
    %14 = vector.broadcast %13 : vector<4x1xi32> to vector<4x64xi32>
    %15 = arith.cmpi eq, %14, %1 : vector<4x64xi32>
    %16 = arith.ori %12, %15 : vector<4x64xi1>
    %17 = arith.extui %16 : vector<4x64xi1> to vector<4x64xi32>
    %18 = arith.sitofp %17 : vector<4x64xi32> to vector<4x64xf32>
    %c0_1 = arith.constant 0 : index
    %c0_2 = arith.constant 0 : index
    %19 = vector.load %arg2[%c0_1, %c0_2] : memref<64x128xf32, #tpu.memory_space<vmem>>, vector<64x128xf32>
    %cst = arith.constant dense<0.000000e+00> : vector<4x128xf32>
    %20 = tpu.matmul %18, %19, %cst {dimension_numbers = #tpu.dot_dimension_numbers<[1], [0], [0], [1], [0, 0, 1, 1], [], []>} : vector<4x64xf32>, vector<64x128xf32>, vector<4x128xf32> -> vector<4x128xf32>
    %c0_3 = arith.constant 0 : index
    %c0_4 = arith.constant 0 : index
    %21 = vector.load %arg3[%c0_3, %c0_4] : memref<4x128xf32, #tpu.memory_space<vmem>>, vector<4x128xf32>
    tpu.vector_store %arg3[%c0_3, %c0_4], %20 {strides = array<i32>} : memref<4x128xf32, #tpu.memory_space<vmem>>, vector<4x128xf32>,
    return
  }
  func.func @transform_0(%arg0: i32) -> (i32, i32) {
    %c0_i32 = arith.constant 0 : i32
    %c0_i32_0 = arith.constant 0 : i32
    return %arg0, %c0_i32 : i32, i32
  }
  func.func @transform_1(%arg0: i32) -> (i32, i32) {
    %c0_i32 = arith.constant 0 : i32
    %c0_i32_0 = arith.constant 0 : i32
    %c0_i32_1 = arith.constant 0 : i32
    return %c0_i32, %c0_i32_0 : i32, i32
  }
  func.func @transform_2(%arg0: i32) -> (i32, i32) {
    %c0_i32 = arith.constant 0 : i32
    %c0_i32_0 = arith.constant 0 : i32
    return %arg0, %c0_i32 : i32, i32
  }
}

</mosaic_0001>

<llo_original>
// kernel: tpu_custom_call.1
$region0: #{tpu_custom_call.1}
  #allocation0 [shape = 'u32[]', space=smem, size = 0x4, offset = 0x4, fixed_abs, tag = 'smem constant byte address 0x4 - core index']
  #allocation1 [shape = 'u32[72,128]{1,0:T(1,128)}', space=vmem, size = 0x9000, scoped, tag = 'internal scratch']
  %s0 = inlined_call_operand.hbm [shape: s32[4,4], index: 0, kind: input, shape index: {}]
  %s1 = inlined_call_operand.hbm [shape: f32[64,128], index: 1, kind: input, shape index: {}]
  %s2 = inlined_call_operand.hbm [shape: f32[4,128], index: 2, kind: output, shape index: {}]
  %s3 = sld [smem:[#allocation0]]
  $region26: #{tpu_custom_call.1} parent=0
    _
  %s5 = ssub.s32 1, %s3
  %s6 = scalar_select 0, %s5, %s3
  $region1: #{tpu_custom_call.1} parent=0
    #allocation2 [shape = 'u8[2048]{0}', space=vmem, size = 0x800, scoped, tag = 'input window, operand 0, single buffered']
    #allocation3 [shape = 's32[1]{0}', space=sflag, size = 0x4, scoped, tag = 'scoped memory for tpu_custom_call.1']
    #allocation4 [shape = 's32[1]{0}', space=sflag, size = 0x4, scoped, tag = 'scoped memory for tpu_custom_call.1']
    #allocation5 [shape = 'u8[32768]{0}', space=vmem, size = 0x8000, scoped, tag = 'input window, operand 1, single buffered']
    #allocation6 [shape = 's32[1]{0}', space=sflag, size = 0x4, scoped, tag = 'scoped memory for tpu_custom_call.1']
    #allocation7 [shape = 'u8[2048]{0}', space=vmem, size = 0x800, scoped, tag = 'output window, operand 0, single buffered']
    %7 = vsyncpa [#allocation3], 0
    %8 = vsyncpa [#allocation6], 0
    %9 = vsyncpa [#allocation4], 0
    // Predicated region
    $region2: #{tpu_custom_call.1} parent=1 // pred_check
      _
    $region3: #{tpu_custom_call.1} parent=1 // pred_check_branch
      %11 = sbr.rel (0) target = $region5
    $region4: #{tpu_custom_call.1} parent=1 // pred_region
      %13 = vsyncadd [#allocation3], 0
      %s15 = sshll.u32 %s0, 4
      %s16 = int_to_ptr.hbm [resolvable:$true] %s15
      %s17 = sshll.u32 [#allocation2], 4
      %s18 = int_to_ptr.vmem [resolvable:$true] %s17
      %20 = dma.hbm_to_vmem [thread:$0]  %s16, 64, %s18, [#allocation3]
    $region5: #{tpu_custom_call.1} parent=1 // pred_fallthru
      _
    // Predicated region
    $region6: #{tpu_custom_call.1} parent=1 // pred_check
      _
    $region7: #{tpu_custom_call.1} parent=1 // pred_check_branch
      %22 = sbr.rel (0) target = $region9
    $region8: #{tpu_custom_call.1} parent=1 // pred_region
      %24 = vsyncadd [#allocation6], 0
      %s25 = sshll.u32 %s1, 4
      %s26 = int_to_ptr.hbm [resolvable:$true] %s25
      %s27 = sshll.u32 [#allocation5], 4
      %s28 = int_to_ptr.vmem [resolvable:$true] %s27
      %33 = dma.hbm_to_vmem [thread:$0]  %s26, 1024, %s28, [#allocation6], 128, 128, 8
    $region9: #{tpu_custom_call.1} parent=1 // pred_fallthru
      _
    // Predicated region
    $region10: #{tpu_custom_call.1} parent=1 // pred_check
      _
    $region11: #{tpu_custom_call.1} parent=1 // pred_check_branch
      %35 = sbr.rel (0) target = $region13
    $region12: #{tpu_custom_call.1} parent=1 // pred_region
      %37 = dma.done [#allocation3], 64
    $region13: #{tpu_custom_call.1} parent=1 // pred_fallthru
      _
    // Predicated region
    $region14: #{tpu_custom_call.1} parent=1 // pred_check
      _
    $region15: #{tpu_custom_call.1} parent=1 // pred_check_branch
      %39 = sbr.rel (0) target = $region17
    $region16: #{tpu_custom_call.1} parent=1 // pred_region
      %41 = dma.done [#allocation6], 1024
    $region17: #{tpu_custom_call.1} parent=1 // pred_fallthru
      _
    %v42 = vld [vmem:[#allocation2] sm:$0xf]
    %v43 = vlaneseq
    %v44 = vand.u32 %v43, 127
    %45 = vset.pattern.permute.xlu0 0
    %46 = vperm.xlu0 %45, %v42
    %v47 = vpop.permute.xlu0 %46
    %vm48 = vcmp.eq.s32.totalorder %v47, %v44
    %49 = vset.pattern.permute.xlu0 1
    %50 = vperm.xlu0 %49, %v42
    %v51 = vpop.permute.xlu0 %50
    %vm52 = vcmp.eq.s32.totalorder %v51, %v44
    %vm53 = vmor %vm48, %vm52
    %54 = vset.pattern.permute.xlu0 2
    %55 = vperm.xlu0 %54, %v42
    %v56 = vpop.permute.xlu0 %55
    %vm57 = vcmp.eq.s32.totalorder %v56, %v44
    %vm58 = vmor %vm53, %vm57
    %59 = vset.pattern.permute.xlu0 3
    %60 = vperm.xlu0 %59, %v42
    %v61 = vpop.permute.xlu0 %60
    %vm62 = vcmp.eq.s32.totalorder %v61, %v44
    %vm63 = vmor %vm58, %vm62
    %v64 = vsel %vm63, 1, 0
    %v65 = vcvt.s32.f32 %v64
    %v66 = vld [vmem:[#allocation5] sm:$0xff]
    %v67 = vld [vmem:[#allocation5 + $0x8] sm:$0xff]
    %v68 = vld [vmem:[#allocation5 + $0x10] sm:$0xff]
    %v69 = vld [vmem:[#allocation5 + $0x18] sm:$0xff]
    %v70 = vld [vmem:[#allocation5 + $0x20] sm:$0xff]
    %v71 = vld [vmem:[#allocation5 + $0x28] sm:$0xff]
    %v72 = vld [vmem:[#allocation5 + $0x30] sm:$0xff]
    %v73 = vld [vmem:[#allocation5 + $0x38] sm:$0xff]
    %vm74 = vcmask 523264
    %v76 = vsel %vm74, %v65, 0
    %78 = vmatpush.msra.mxu0 0.0
    %79 = vmatpush.msra.mxu0 0.0
    %80 = vmatpush.msra.mxu0 0.0
    %81 = vmatpush.msra.mxu0 0.0
    %82 = vmatpush.msra.mxu0 0.0
    %83 = vmatpush.msra.mxu0 0.0
    %84 = vmatpush.msra.mxu0 0.0
    %85 = vmatpush.msra.mxu0 0.0
    %86 = vmatpush.msra.mxu0 %v73
    %87 = vmatpush.msra.mxu0 %v72
    %88 = vmatpush.msra.mxu0 %v71
    %89 = vmatpush.msra.mxu0 %v70
    %90 = vmatpush.msra.mxu0 %v69
    %91 = vmatpush.msra.mxu0 %v68
    %92 = vmatpush.msra.mxu0 %v67
    %93 = vmatpush.msra.mxu0 %v66
    %94 = vmatmul.f32.gmra.mxu0 %v76
    %v95 = vpop.f32.mrf.mxu0
    %v96 = vadd.f32 0.0, %v95
    %97 = vdwg.mxu0
    %98 = vst [vmem:[#allocation7] sm:$0xf] %v96
    // Predicated region
    $region18: #{tpu_custom_call.1} parent=1 // pred_check
      _
    $region19: #{tpu_custom_call.1} parent=1 // pred_check_branch
      %100 = sbr.rel (0) target = $region21
    $region20: #{tpu_custom_call.1} parent=1 // pred_region
      %102 = vsyncadd [#allocation4], 0
      %s104 = sshll.u32 [#allocation7], 4
      %s105 = int_to_ptr.vmem [resolvable:$true] %s104
      %s106 = sshll.u32 %s2, 4
      %s107 = int_to_ptr.hbm [resolvable:$true] %s106
      %109 = dma.vmem_to_hbm [thread:$0]  %s105, 64, %s107, [#allocation4]
    $region21: #{tpu_custom_call.1} parent=1 // pred_fallthru
      _
    // Predicated region
    $region22: #{tpu_custom_call.1} parent=1 // pred_check
      _
    $region23: #{tpu_custom_call.1} parent=1 // pred_check_branch
      %111 = sbr.rel (0) target = $region25
    $region24: #{tpu_custom_call.1} parent=1 // pred_region
      %113 = dma.done [#allocation4], 64
    $region25: #{tpu_custom_call.1} parent=1 // pred_fallthru
      _
    %114 = vsyncpa [#allocation3], 1
    %115 = vsyncpa [#allocation6], 1
    %116 = vsyncpa [#allocation4], 1

</llo_original>
